<compile_context>
chip_gen: v7x
topology: tpu7x:2x2x1
jax: 0.10.0
libtpu: 0.0.40
codegen_flags: <defaults>
</compile_context>

<pallas_src>
import jax
import jax.numpy as jnp
from jax.experimental import pallas as pl
from jax.experimental.pallas import tpu as pltpu


def _prelu_kernel_scalar_w(w_ref, re_ref, im_ref, out_re_ref, out_im_ref):
    """PReLU on both planes; w_ref is a (1,) f32 scalar in SMEM."""
    w = w_ref[0]
    re = re_ref[...]
    im = im_ref[...]
    out_re_ref[...] = jnp.where(re >= 0, re, w * re)
    out_im_ref[...] = jnp.where(im >= 0, im, w * im)


def _prelu_kernel_row_w(w_ref, re_ref, im_ref, out_re_ref, out_im_ref):
    """PReLU on both planes; w_ref is a (tile_r, 1) per-row weight column."""
    w = w_ref[...]
    re = re_ref[...]
    im = im_ref[...]
    out_re_ref[...] = jnp.where(re >= 0, re, w * re)
    out_im_ref[...] = jnp.where(im >= 0, im, w * im)


def _round_up(x, m):
    return ((x + m - 1) // m) * m


def complex_prelu(x_complex, weight):
    """x_complex: (N, C, H, W) complex array.  weight: (num_parameters,) real."""
    N, C, H, W = x_complex.shape
    R, L = N * C, H * W
    real_dtype = jnp.real(x_complex).dtype

    re = jnp.real(x_complex).reshape(R, L)
    im = jnp.imag(x_complex).reshape(R, L)

    # Tiles: rows multiple of 8 (or full), lanes multiple of 128 (or full L),
    # capped at 512 x 1024 f32 = 2 MiB per tile (v7x-safe with double buffering).
    tile_r = min(512, _round_up(R, 8))
    tile_l = L if L <= 1024 else 1024
    grid = (pl.cdiv(R, tile_r), pl.cdiv(L, tile_l))

    plane_spec = pl.BlockSpec((tile_r, tile_l), lambda i, j: (i, j))

    num_parameters = weight.shape[0]
    if num_parameters == 1:
        w_arg = weight.astype(real_dtype).reshape(1)
        w_spec = pl.BlockSpec(memory_space=pltpu.MemorySpace.SMEM)
        kernel = _prelu_kernel_scalar_w
    else:
        assert num_parameters == C, "num_parameters must be 1 or C"
        w_arg = jnp.tile(weight.astype(real_dtype), (N,)).reshape(R, 1)
        w_spec = pl.BlockSpec((tile_r, 1), lambda i, j: (i, 0))
        kernel = _prelu_kernel_row_w

    out_re, out_im = pl.pallas_call(
        kernel,
        out_shape=(
            jax.ShapeDtypeStruct((R, L), real_dtype),
            jax.ShapeDtypeStruct((R, L), real_dtype),
        ),
        grid_spec=pltpu.PrefetchScalarGridSpec(
            num_scalar_prefetch=0,
            grid=grid,
            in_specs=[w_spec, plane_spec, plane_spec],
            out_specs=[plane_spec, plane_spec],
        ),
        input_output_aliases={1: 0, 2: 1},
        compiler_params=pltpu.CompilerParams(
            dimension_semantics=("parallel", "parallel"),
            vmem_limit_bytes=48 * 1024 * 1024,
        ),
    )(w_arg, re, im)

    out = jax.lax.complex(out_re, out_im)  # guaranteed complex64 (no weak typing)
    return out.reshape(N, C, H, W)


complex_prelu_jit = jax.jit(complex_prelu)


if __name__ == "__main__":
    key = jax.random.PRNGKey(0)
    k_re, k_im = jax.random.split(key)

    N, C, H, W = 2, 4, 16, 16
    x_re = jax.random.normal(k_re, (N, C, H, W), dtype=jnp.float32)
    x_im = jax.random.normal(k_im, (N, C, H, W), dtype=jnp.float32)
    x = jax.lax.complex(x_re, x_im)  # complex64

    def prelu_plane_ref(v, w):
        wc = w.reshape(1, -1, 1, 1) if w.shape[0] == C else w.reshape(1, 1, 1, 1)
        return jnp.where(v >= 0, v, wc * v)

    # --- module default: num_parameters=1, init=0.25 (deterministic) ---
    w1 = jnp.full((1,), 0.25, dtype=jnp.float32)
    out1 = jax.block_until_ready(complex_prelu_jit(x, w1))
    ref1 = jax.lax.complex(prelu_plane_ref(x_re, w1), prelu_plane_ref(x_im, w1))
    assert out1.shape == (N, C, H, W)
    assert out1.dtype == x.dtype
    assert jnp.allclose(out1, ref1, atol=1e-6, rtol=1e-6)

    # --- per-channel weights (num_parameters == C) exercises the VMEM-column path ---
    wc = jnp.array([0.1, 0.2, 0.25, 0.3], dtype=jnp.float32)
    out2 = jax.block_until_ready(complex_prelu_jit(x, wc))
    ref2 = jax.lax.complex(prelu_plane_ref(x_re, wc), prelu_plane_ref(x_im, wc))
    assert out2.dtype == x.dtype
    assert jnp.allclose(out2, ref2, atol=1e-6, rtol=1e-6)

    print("KERNEL_OK")
</pallas_src>

<mosaic_0001>
module attributes {stable_mosaic.version = 11 : i64} {
  func.func @_prelu_kernel_scalar_w(%arg0: i32, %arg1: i32, %arg2: memref<1xf32, #tpu.memory_space<smem>>, %arg3: memref<8x256xf32, #tpu.memory_space<vmem>>, %arg4: memref<8x256xf32, #tpu.memory_space<vmem>>, %arg5: memref<8x256xf32, #tpu.memory_space<vmem>>, %arg6: memref<8x256xf32, #tpu.memory_space<vmem>>) attributes {dimension_semantics = [#tpu.dimension_semantics<parallel>, #tpu.dimension_semantics<parallel>], iteration_bounds = array<i64: 1, 1>, scalar_prefetch = 0 : i64, scratch_operands = 0 : i64, tpu.core_type = #tpu.core_type<tc>, window_params = [{transform_indices = @transform_0, window_bounds = array<i64: 1>}, {transform_indices = @transform_1, window_bounds = array<i64: 8, 256>}, {transform_indices = @transform_2, window_bounds = array<i64: 8, 256>}, {transform_indices = @transform_3, window_bounds = array<i64: 8, 256>}, {transform_indices = @transform_4, window_bounds = array<i64: 8, 256>}]} {
    %c0 = arith.constant 0 : index
    %0 = memref.load %arg2[%c0] : memref<1xf32, #tpu.memory_space<smem>>
    %c0_0 = arith.constant 0 : index
    %c0_1 = arith.constant 0 : index
    %1 = vector.load %arg3[%c0_0, %c0_1] : memref<8x256xf32, #tpu.memory_space<vmem>>, vector<8x256xf32>
    %c0_2 = arith.constant 0 : index
    %c0_3 = arith.constant 0 : index
    %2 = vector.load %arg4[%c0_2, %c0_3] : memref<8x256xf32, #tpu.memory_space<vmem>>, vector<8x256xf32>
    %cst = arith.constant 0.000000e+00 : f32
    %3 = vector.broadcast %cst : f32 to vector<8x256xf32>
    %4 = arith.cmpf oge, %1, %3 : vector<8x256xf32>
    %5 = vector.broadcast %0 : f32 to vector<8x256xf32>
    %6 = arith.mulf %5, %1 : vector<8x256xf32>
    %7 = arith.select %4, %1, %6 : vector<8x256xi1>, vector<8x256xf32>
    %c0_4 = arith.constant 0 : index
    %c0_5 = arith.constant 0 : index
    %8 = vector.load %arg5[%c0_4, %c0_5] : memref<8x256xf32, #tpu.memory_space<vmem>>, vector<8x256xf32>
    tpu.vector_store %arg5[%c0_4, %c0_5], %7 {strides = array<i32>} : memref<8x256xf32, #tpu.memory_space<vmem>>, vector<8x256xf32>,
    %cst_6 = arith.constant 0.000000e+00 : f32
    %9 = vector.broadcast %cst_6 : f32 to vector<8x256xf32>
    %10 = arith.cmpf oge, %2, %9 : vector<8x256xf32>
    %11 = vector.broadcast %0 : f32 to vector<8x256xf32>
    %12 = arith.mulf %11, %2 : vector<8x256xf32>
    %13 = arith.select %10, %2, %12 : vector<8x256xi1>, vector<8x256xf32>
    %c0_7 = arith.constant 0 : index
    %c0_8 = arith.constant 0 : index
    %14 = vector.load %arg6[%c0_7, %c0_8] : memref<8x256xf32, #tpu.memory_space<vmem>>, vector<8x256xf32>
    tpu.vector_store %arg6[%c0_7, %c0_8], %13 {strides = array<i32>} : memref<8x256xf32, #tpu.memory_space<vmem>>, vector<8x256xf32>,
    return
  }
  func.func @transform_0(%arg0: i32, %arg1: i32) -> i32 {
    %c0_i32 = arith.constant 0 : i32
    %c0_i32_0 = arith.constant 0 : i32
    return %c0_i32 : i32
  }
  func.func @transform_1(%arg0: i32, %arg1: i32) -> (i32, i32) {
    %c0_i32 = arith.constant 0 : i32
    return %arg0, %arg1 : i32, i32
  }
  func.func @transform_2(%arg0: i32, %arg1: i32) -> (i32, i32) {
    %c0_i32 = arith.constant 0 : i32
    return %arg0, %arg1 : i32, i32
  }
  func.func @transform_3(%arg0: i32, %arg1: i32) -> (i32, i32) {
    %c0_i32 = arith.constant 0 : i32
    return %arg0, %arg1 : i32, i32
  }
  func.func @transform_4(%arg0: i32, %arg1: i32) -> (i32, i32) {
    %c0_i32 = arith.constant 0 : i32
    return %arg0, %arg1 : i32, i32
  }
}

</mosaic_0001>

<llo_original>
// kernel: custom-call.1
$region0: #{custom-call.1}
  %s0 = inlined_call_operand.hbm [shape: c64[2,4,16,16], index: 0, kind: input, shape index: {}]
  %s1 = inlined_call_operand.vmem [shape: f32[2,4,16,16], index: 1, kind: output, shape index: {}]
  %s2 = scalar_lea.hbm %s0, 2048
  $region1: #{custom-call.1} parent=0
    #allocation0 [shape = 's32[1]{0}', space=sflag, size = 0x4, scoped, tag = 'scoped memory for custom-call.1']
    %3 = vsyncpa [#allocation0], 0
    %s4 = sshll.u32 %s1, 4
    %s5 = int_to_ptr.vmem [resolvable:$true] %s4
    %7 = dma.hbm_to_vmem [thread:$0]  %s2, 2048, %s5, [#allocation0]
    %8 = dma.done [#allocation0], 2048
    %9 = vsyncpa [#allocation0], 1

// kernel: custom-call
$region0: #{custom-call}
  %s0 = inlined_call_operand.hbm [shape: c64[2,4,16,16], index: 0, kind: input, shape index: {}]
  %s1 = inlined_call_operand.vmem [shape: f32[2,4,16,16], index: 1, kind: output, shape index: {}]
  $region1: #{custom-call} parent=0
    #allocation0 [shape = 's32[1]{0}', space=sflag, size = 0x4, scoped, tag = 'scoped memory for custom-call']
    %2 = vsyncpa [#allocation0], 0
    %s3 = sshll.u32 %s1, 4
    %s4 = int_to_ptr.vmem [resolvable:$true] %s3
    %6 = dma.hbm_to_vmem [thread:$0]  %s0, 2048, %s4, [#allocation0]
    %7 = dma.done [#allocation0], 2048
    %8 = vsyncpa [#allocation0], 1

// kernel: custom-call.2
$region0: #{custom-call.2}
  %s0 = inlined_call_operand.vmem [shape: f32[2,4,16,16], index: 0, kind: input, shape index: {}]
  %s1 = inlined_call_operand.vmem [shape: f32[2,4,16,16], index: 1, kind: input, shape index: {}]
  %s2 = inlined_call_operand.hbm [shape: c64[2,4,16,16], index: 2, kind: output, shape index: {}]
  %s3 = scalar_lea.hbm %s2, 2048
  $region1: #{custom-call.2} parent=0
    #allocation0 [shape = 's32[1]{0}', space=sflag, size = 0x4, scoped, tag = 'scoped memory for custom-call.2']
    %4 = vsyncpa [#allocation0], 0
    %s5 = sshll.u32 %s0, 4
    %s6 = int_to_ptr.vmem [resolvable:$true] %s5
    %8 = dma.vmem_to_hbm [thread:$0]  %s6, 2048, %s2, [#allocation0]
    %9 = dma.done [#allocation0], 2048
    %10 = vsyncpa [#allocation0], 1
  $region2: #{custom-call.2} parent=0
    #allocation1 [shape = 's32[1]{0}', space=sflag, size = 0x4, scoped, tag = 'scoped memory for custom-call.2']
    %11 = vsyncpa [#allocation1], 0
    %s12 = sshll.u32 %s1, 4
    %s13 = int_to_ptr.vmem [resolvable:$true] %s12
    %15 = dma.vmem_to_hbm [thread:$0]  %s13, 2048, %s3, [#allocation1]
    %16 = dma.done [#allocation1], 2048
    %17 = vsyncpa [#allocation1], 1

// kernel: complex_prelu.1
$region0: #{complex_prelu.1}
  #allocation0 [shape = 'u32[]', space=smem, size = 0x4, offset = 0x4, fixed_abs, tag = 'smem constant byte address 0x4 - core index']
  #allocation1 [shape = 'u32[144,128]{1,0:T(1,128)}', space=vmem, size = 0x12000, scoped, tag = 'internal scratch']
  #allocation2 [shape = 'f32[1]{0:T(128)S(6)}', space=smem, size = 0x200, scoped, tag = 'scoped memory for complex_prelu.1']
  %s0 = inlined_call_operand.<no memory space> [shape: f32[1], index: 0, kind: input, shape index: {}]
  %s1 = inlined_call_operand.vmem [shape: f32[8,256], index: 1, kind: input, shape index: {}, may-alias: {1,3}]
  %s2 = inlined_call_operand.vmem [shape: f32[8,256], index: 2, kind: input, shape index: {}, may-alias: {2,4}]
  %s3 = inlined_call_operand.vmem [shape: f32[8,256], index: 3, kind: output, shape index: {0}, may-alias: {1,3}]
  %s4 = inlined_call_operand.vmem [shape: f32[8,256], index: 4, kind: output, shape index: {1}, may-alias: {2,4}]
  %5 = xla_tuple %s3, %s4
  %s6 = sld [smem:[#allocation0]]
  $region30: #{complex_prelu.1} parent=0
    _
  %s8 = ssub.s32 1, %s6
  %s9 = scalar_select 0, %s8, %s6
  %10 = sst [smem:[#allocation2]] %s0
  // Predicated region
  $region2: #{complex_prelu.1} parent=0 // pred_check
    _
  $region3: #{complex_prelu.1} parent=0 // pred_check_branch
    %12 = sbr.rel (0) target = $region5
  $region4: #{complex_prelu.1} parent=0 // pred_region
    _
  $region5: #{complex_prelu.1} parent=0 // pred_fallthru
    _
  // Predicated region
  $region6: #{complex_prelu.1} parent=0 // pred_check
    _
  $region7: #{complex_prelu.1} parent=0 // pred_check_branch
    %14 = sbr.rel (0) target = $region9
  $region8: #{complex_prelu.1} parent=0 // pred_region
    _
  $region9: #{complex_prelu.1} parent=0 // pred_fallthru
    _
  // Predicated region
  $region10: #{complex_prelu.1} parent=0 // pred_check
    _
  $region11: #{complex_prelu.1} parent=0 // pred_check_branch
    %16 = sbr.rel (0) target = $region13
  $region12: #{complex_prelu.1} parent=0 // pred_region
    _
  $region13: #{complex_prelu.1} parent=0 // pred_fallthru
    _
  %s17 = sld [smem:[#allocation2]]
  %v18 = vld [vmem:[%s1] sm:$0xff]
  %v19 = vld [vmem:[%s1 + $0x8] sm:$0xff]
  %v20 = vld [vmem:[%s2] sm:$0xff]
  %v21 = vld [vmem:[%s2 + $0x8] sm:$0xff]
  %vm22 = vcmp.ge.f32.partialorder %v18, 0.0
  %vm23 = vcmp.ge.f32.partialorder %v19, 0.0
  %v24 = vstv %s17
  %v25 = vmul.f32 %v24, %v18
  %v26 = vmul.f32 %v24, %v19
  %v27 = vsel %vm22, %v18, %v25
  %v28 = vsel %vm23, %v19, %v26
  %29 = vst [vmem:[%s3] sm:$0xff] %v27
  %30 = vst [vmem:[%s3 + $0x8] sm:$0xff] %v28
  %vm31 = vcmp.ge.f32.partialorder %v20, 0.0
  %vm32 = vcmp.ge.f32.partialorder %v21, 0.0
  %v33 = vmul.f32 %v24, %v20
  %v34 = vmul.f32 %v24, %v21
  %v35 = vsel %vm31, %v20, %v33
  %v36 = vsel %vm32, %v21, %v34
  %37 = vst [vmem:[%s4] sm:$0xff] %v35
  %38 = vst [vmem:[%s4 + $0x8] sm:$0xff] %v36
  // Predicated region
  $region14: #{complex_prelu.1} parent=0 // pred_check
    _
  $region15: #{complex_prelu.1} parent=0 // pred_check_branch
    %40 = sbr.rel (0) target = $region17
  $region16: #{complex_prelu.1} parent=0 // pred_region
    _
  $region17: #{complex_prelu.1} parent=0 // pred_fallthru
    _
  // Predicated region
  $region18: #{complex_prelu.1} parent=0 // pred_check
    _
  $region19: #{complex_prelu.1} parent=0 // pred_check_branch
    %42 = sbr.rel (0) target = $region21
  $region20: #{complex_prelu.1} parent=0 // pred_region
    _
  $region21: #{complex_prelu.1} parent=0 // pred_fallthru
    _
  // Predicated region
  $region22: #{complex_prelu.1} parent=0 // pred_check
    _
  $region23: #{complex_prelu.1} parent=0 // pred_check_branch
    %44 = sbr.rel (0) target = $region25
  $region24: #{complex_prelu.1} parent=0 // pred_region
    _
  $region25: #{complex_prelu.1} parent=0 // pred_fallthru
    _
  // Predicated region
  $region26: #{complex_prelu.1} parent=0 // pred_check
    _
  $region27: #{complex_prelu.1} parent=0 // pred_check_branch
    %46 = sbr.rel (0) target = $region29
  $region28: #{complex_prelu.1} parent=0 // pred_region
    _
  $region29: #{complex_prelu.1} parent=0 // pred_fallthru
    _

</llo_original>
